<compile_context>
chip_gen: v7x
topology: tpu7x:2x2x1
jax: 0.10.0
libtpu: 0.0.40
codegen_flags: <defaults>
</compile_context>

<pallas_src>
import functools
import math

import numpy as np

import jax
import jax.numpy as jnp
from jax.experimental import pallas as pl
from jax.experimental.pallas import tpu as pltpu


_LANE = 128
_VMEM_LIMIT = 32 * 1024 * 1024     # scoped VMEM ceiling (safe on v5e/v6e/v7x)
_BLOCK_BYTES = 4 * 1024 * 1024     # target VMEM bytes per (single) input block
_TOTAL_BUDGET = 12 * 1024 * 1024   # target total working set (v7x-friendly)
_TN_CAP = 8192                     # max lane width per block (multiple of 128)
_TK_CAP = 2048                     # max reduction-chunk width (lane-reduce case)


def _round_up(x, m):
    return (x + m - 1) // m * m


def _sublane(dtype):
    # sublane packing: 8 for 4-byte, 16 for 2-byte, 32 for 1-byte dtypes
    return max(8, 32 // jnp.dtype(dtype).itemsize)


# ---------------------------------------------------------------------------
# Kernel A: reduce over the sublane axis of a (1, TK, TN) block.
# Used when the reduced dimension is NOT last -> kept dim is lane-dense.
# ---------------------------------------------------------------------------
def _sum_sublane_kernel(x_ref, o_ref, acc_ref):
    k = pl.program_id(2)

    @pl.when(k == 0)
    def _():
        acc_ref[...] = jnp.zeros_like(acc_ref)

    acc_ref[...] += jnp.sum(x_ref[...].astype(acc_ref.dtype), axis=1)

    @pl.when(k == pl.num_programs(2) - 1)
    def _():
        o_ref[...] = acc_ref[...].reshape(o_ref.shape).astype(o_ref.dtype)


def _sum_middle_axis(x3, acc_dtype, out_dtype, item, sub):
    A, D, B = x3.shape
    max_elems = _BLOCK_BYTES // item

    # kept axis -> lanes (lane-dense output)
    TN = B if B <= _TN_CAP else _TN_CAP
    tn_vmem = _round_up(TN, _LANE)

    # reduction axis -> sublanes; tile it if it does not fit the budget
    tk_budget = max(sub, (max_elems // tn_vmem) // sub * sub)
    if D <= tk_budget:
        TK, D_pad = D, D
    else:
        TK = tk_budget
        D_pad = _round_up(D, TK)
        x3 = jnp.pad(x3, ((0, 0), (0, D_pad - D), (0, 0)))  # zeros: sum-safe

    grid = (A, pl.cdiv(B, TN), D_pad // TK)

    out = pl.pallas_call(
        _sum_sublane_kernel,
        out_shape=jax.ShapeDtypeStruct((A, 1, B), out_dtype),
        grid_spec=pltpu.PrefetchScalarGridSpec(
            num_scalar_prefetch=0,
            grid=grid,
            in_specs=[pl.BlockSpec((1, TK, TN), lambda a, b, k: (a, k, b))],
            out_specs=pl.BlockSpec((1, 1, TN), lambda a, b, k: (a, 0, b)),
            scratch_shapes=[pltpu.VMEM((1, TN), acc_dtype)],
        ),
        compiler_params=pltpu.CompilerParams(
            dimension_semantics=("parallel", "parallel", "arbitrary"),
            vmem_limit_bytes=_VMEM_LIMIT,
        ),
    )(x3)
    return out[:, 0, :]


# ---------------------------------------------------------------------------
# Kernel B: reduce over the lane axis of a (TM, TK) block.
# Used when the reduced dimension IS last (elements contiguous -> lanes).
# ---------------------------------------------------------------------------
def _sum_lane_kernel(x_ref, o_ref, acc_ref):
    k = pl.program_id(1)

    @pl.when(k == 0)
    def _():
        acc_ref[...] = jnp.zeros_like(acc_ref)

    acc_ref[...] += jnp.sum(x_ref[...].astype(acc_ref.dtype), axis=-1,
                            keepdims=True)

    @pl.when(k == pl.num_programs(1) - 1)
    def _():
        o_ref[...] = acc_ref[...].astype(o_ref.dtype)


def _sum_last_axis(x2, acc_dtype, out_dtype, item, sub):
    R, D = x2.shape

    # reduction axis: full width if small, else 2048-wide zero-padded chunks
    if D <= _TK_CAP:
        TK, D_pad = D, D
    else:
        TK = _TK_CAP
        D_pad = _round_up(D, TK)
    tk_vmem = _round_up(TK, _LANE)

    # rows: pad only to sublane packing; size TM from total VMEM budget
    # (accounting for lane padding of input, output and accumulator blocks).
    R_pad = _round_up(R, sub)
    per_row = (2 * tk_vmem * item                              # dbl-buffered input
               + 2 * _LANE * jnp.dtype(out_dtype).itemsize      # dbl-buffered output
               + _LANE * jnp.dtype(acc_dtype).itemsize)         # accumulator
    TM = max(sub, (_TOTAL_BUDGET // per_row) // sub * sub)
    TM = min(TM, R_pad)

    pad_r, pad_d = R_pad - R, D_pad - D
    if pad_r or pad_d:
        x2 = jnp.pad(x2, ((0, pad_r), (0, pad_d)))  # zeros: sum-safe

    grid = (pl.cdiv(R_pad, TM), D_pad // TK)

    out = pl.pallas_call(
        _sum_lane_kernel,
        out_shape=jax.ShapeDtypeStruct((R_pad, 1), out_dtype),
        grid_spec=pltpu.PrefetchScalarGridSpec(
            num_scalar_prefetch=0,
            grid=grid,
            in_specs=[pl.BlockSpec((TM, TK), lambda i, k: (i, k))],
            out_specs=pl.BlockSpec((TM, 1), lambda i, k: (i, 0)),
            scratch_shapes=[pltpu.VMEM((TM, 1), acc_dtype)],
        ),
        compiler_params=pltpu.CompilerParams(
            dimension_semantics=("parallel", "arbitrary"),
            vmem_limit_bytes=_VMEM_LIMIT,
        ),
    )(x2)
    return out[:R, 0]


# ---------------------------------------------------------------------------
# Public wrapper: equivalent of zennit Sum(dim).forward(x)
# ---------------------------------------------------------------------------
@functools.partial(jax.jit, static_argnames=("dim",))
def pallas_sum(x, dim=-1):
    ndim = x.ndim
    dim = dim % ndim
    shape = x.shape
    out_shape = shape[:dim] + shape[dim + 1:]

    # Output dtype matches jnp.sum / torch.sum for float dtypes; floats are
    # accumulated in f32, integers in their promoted integer dtype.
    out_dtype = jax.eval_shape(
        lambda t: jnp.sum(t, axis=dim), jax.ShapeDtypeStruct(x.shape, x.dtype)
    ).dtype
    acc_dtype = jnp.float32 if jnp.issubdtype(x.dtype, jnp.floating) else out_dtype

    A = math.prod(shape[:dim])
    D = shape[dim]
    B = math.prod(shape[dim + 1:])

    item = jnp.dtype(x.dtype).itemsize
    sub = _sublane(x.dtype)

    if B == 1:
        # reduced dim is (effectively) last: contiguous -> lane reduction
        res = _sum_last_axis(x.reshape(A, D), acc_dtype, out_dtype, item, sub)
    else:
        # reduced dim not last: pure reshape to (A, D, B), sublane reduction,
        # kept dim lane-dense -> no moveaxis/transpose HBM pass needed
        res = _sum_middle_axis(x.reshape(A, D, B), acc_dtype, out_dtype, item, sub)
    return res.reshape(out_shape)


if __name__ == "__main__":
    key = jax.random.PRNGKey(0)
    x = jax.random.normal(key, (2, 4, 16, 16), dtype=jnp.float32)

    # Default module config: dim=-1 (same as Sum()).
    y = pallas_sum(x, dim=-1)
    jax.block_until_ready(y)
    y_ref = jnp.sum(x, axis=-1)
    assert y.shape == y_ref.shape, (y.shape, y_ref.shape)
    assert y.dtype == y_ref.dtype, (y.dtype, y_ref.dtype)
    np.testing.assert_allclose(np.asarray(y), np.asarray(y_ref),
                               rtol=1e-5, atol=1e-5)

    # Non-default axis (exercises the sublane-reduction / lane-dense path).
    y2 = pallas_sum(x, dim=1)
    jax.block_until_ready(y2)
    np.testing.assert_allclose(np.asarray(y2), np.asarray(jnp.sum(x, axis=1)),
                               rtol=1e-5, atol=1e-5)

    # Non-divisible shapes exercise padding / partial-block handling.
    x3 = jax.random.normal(jax.random.PRNGKey(1), (3, 5, 7), dtype=jnp.float32)
    np.testing.assert_allclose(np.asarray(pallas_sum(x3, dim=2)),
                               np.asarray(jnp.sum(x3, axis=2)),
                               rtol=1e-5, atol=1e-5)
    np.testing.assert_allclose(np.asarray(pallas_sum(x3, dim=0)),
                               np.asarray(jnp.sum(x3, axis=0)),
                               rtol=1e-5, atol=1e-5)

    print("KERNEL_OK")
</pallas_src>

<mosaic_0001>
module attributes {stable_mosaic.version = 11 : i64} {
  func.func @_sum_lane_kernel(%arg0: i32, %arg1: i32, %arg2: memref<128x16xf32, #tpu.memory_space<vmem>>, %arg3: memref<128x1xf32, #tpu.memory_space<vmem>>, %arg4: memref<128x1xf32, #tpu.memory_space<vmem>>) attributes {dimension_semantics = [#tpu.dimension_semantics<parallel>, #tpu.dimension_semantics<arbitrary>], iteration_bounds = array<i64: 1, 1>, scalar_prefetch = 0 : i64, scratch_operands = 1 : i64, tpu.core_type = #tpu.core_type<tc>, window_params = [{transform_indices = @transform_0, window_bounds = array<i64: 128, 16>}, {transform_indices = @transform_1, window_bounds = array<i64: 128, 1>}]} {
    %c0_i32 = arith.constant 0 : i32
    %0 = arith.cmpi eq, %arg1, %c0_i32 : i32
    %1 = arith.extui %0 : i1 to i32
    %c0_i32_0 = arith.constant 0 : i32
    %2 = arith.cmpi ne, %1, %c0_i32_0 : i32
    scf.if %2 {
      %cst_8 = arith.constant 0.000000e+00 : f32
      %12 = vector.broadcast %cst_8 : f32 to vector<128x1xf32>
      %c0_9 = arith.constant 0 : index
      %c0_10 = arith.constant 0 : index
      %13 = vector.load %arg4[%c0_9, %c0_10] : memref<128x1xf32, #tpu.memory_space<vmem>>, vector<128x1xf32>
      tpu.vector_store %arg4[%c0_9, %c0_10], %12 {strides = array<i32>} : memref<128x1xf32, #tpu.memory_space<vmem>>, vector<128x1xf32>,
    } else {
    }
    %c0 = arith.constant 0 : index
    %c0_1 = arith.constant 0 : index
    %3 = vector.load %arg4[%c0, %c0_1] : memref<128x1xf32, #tpu.memory_space<vmem>>, vector<128x1xf32>
    %c0_2 = arith.constant 0 : index
    %c0_3 = arith.constant 0 : index
    %4 = vector.load %arg2[%c0_2, %c0_3] : memref<128x16xf32, #tpu.memory_space<vmem>>, vector<128x16xf32>
    %cst = arith.constant dense<0.000000e+00> : vector<128xf32>
    %5 = vector.multi_reduction <add>, %4, %cst [1] : vector<128x16xf32> to vector<128xf32>
    %6 = vector.shape_cast %5 : vector<128xf32> to vector<128x1xf32>
    %7 = arith.addf %3, %6 : vector<128x1xf32>
    %c0_4 = arith.constant 0 : index
    %c0_5 = arith.constant 0 : index
    %8 = vector.load %arg4[%c0_4, %c0_5] : memref<128x1xf32, #tpu.memory_space<vmem>>, vector<128x1xf32>
    tpu.vector_store %arg4[%c0_4, %c0_5], %7 {strides = array<i32>} : memref<128x1xf32, #tpu.memory_space<vmem>>, vector<128x1xf32>,
    %c0_i32_6 = arith.constant 0 : i32
    %9 = arith.cmpi eq, %arg1, %c0_i32_6 : i32
    %10 = arith.extui %9 : i1 to i32
    %c0_i32_7 = arith.constant 0 : i32
    %11 = arith.cmpi ne, %10, %c0_i32_7 : i32
    scf.if %11 {
      %c0_8 = arith.constant 0 : index
      %c0_9 = arith.constant 0 : index
      %12 = vector.load %arg4[%c0_8, %c0_9] : memref<128x1xf32, #tpu.memory_space<vmem>>, vector<128x1xf32>
      %c0_10 = arith.constant 0 : index
      %c0_11 = arith.constant 0 : index
      %13 = vector.load %arg3[%c0_10, %c0_11] : memref<128x1xf32, #tpu.memory_space<vmem>>, vector<128x1xf32>
      tpu.vector_store %arg3[%c0_10, %c0_11], %12 {strides = array<i32>} : memref<128x1xf32, #tpu.memory_space<vmem>>, vector<128x1xf32>,
    } else {
    }
    return
  }
  func.func @transform_0(%arg0: i32, %arg1: i32) -> (i32, i32) {
    %c0_i32 = arith.constant 0 : i32
    return %arg0, %arg1 : i32, i32
  }
  func.func @transform_1(%arg0: i32, %arg1: i32) -> (i32, i32) {
    %c0_i32 = arith.constant 0 : i32
    %c0_i32_0 = arith.constant 0 : i32
    return %arg0, %c0_i32 : i32, i32
  }
}

</mosaic_0001>

<llo_original>
// kernel: squeeze.1
$region0: #{squeeze.1}
  %s0 = inlined_call_operand.vmem [shape: f32[128], index: 0, kind: input, shape index: {}]
  %s1 = inlined_call_operand.hbm [shape: f32[2,4,16], index: 1, kind: output, shape index: {}]
  $region1: #{squeeze.1} parent=0
    #allocation0 [shape = 'u8[4096]{0}', space=vmem, size = 0x1000, scoped, tag = 'operand span for operand 1']
    #allocation1 [shape = 's32[1]{0}', space=sflag, size = 0x4, scoped, tag = 'scoped memory for squeeze.1']
    #allocation2 [shape = 'u8[8192]{0}', space=vmem, size = 0x2000, scoped, tag = 'scoped mem for output reshape']
    #allocation3 [shape = 'u8[4096]{0}', space=vmem, size = 0x1000, scoped, tag = 'scoped mem for input reshape']
    %2 = vsyncpa [#allocation1], 0
    %s4 = sshllo.u32 0, 1
    %v5 = vld [vmem:[%s0] sm:%s4]
    %6 = vst [vmem:[#allocation3] sm:%s4] %v5
    %v7 = vld [vmem:[#allocation3] sm:$0x1]
    %vm8 = vcmask 130048
    %9 = vst.msk [vmem:[#allocation2] sm:$0x1] %vm8, %v7
    %v10 = vld [vmem:[#allocation3] sm:$0x1]
    %11 = vrot.lane.b32.xlu0 %v10, 112
    %v12 = vpop.permute.xlu0 %11
    %vm13 = vcmask 130048
    %s14 = scalar_lea.vmem [#allocation2], 1
    %15 = vst.msk [vmem:[%s14] sm:$0x1] %vm13, %v12
    %v16 = vld [vmem:[#allocation3] sm:$0x1]
    %17 = vrot.lane.b32.xlu0 %v16, 96
    %v18 = vpop.permute.xlu0 %17
    %vm19 = vcmask 130048
    %s20 = scalar_lea.vmem [#allocation2], 2
    %21 = vst.msk [vmem:[%s20] sm:$0x1] %vm19, %v18
    %v22 = vld [vmem:[#allocation3] sm:$0x1]
    %23 = vrot.lane.b32.xlu0 %v22, 80
    %v24 = vpop.permute.xlu0 %23
    %vm25 = vcmask 130048
    %s26 = scalar_lea.vmem [#allocation2], 3
    %27 = vst.msk [vmem:[%s26] sm:$0x1] %vm25, %v24
    %v28 = vld [vmem:[#allocation3] sm:$0x1]
    %29 = vrot.lane.b32.xlu0 %v28, 64
    %v30 = vpop.permute.xlu0 %29
    %vm31 = vcmask 130048
    %s32 = scalar_lea.vmem [#allocation2], 8
    %33 = vst.msk [vmem:[%s32] sm:$0x1] %vm31, %v30
    %v34 = vld [vmem:[#allocation3] sm:$0x1]
    %35 = vrot.lane.b32.xlu0 %v34, 48
    %v36 = vpop.permute.xlu0 %35
    %vm37 = vcmask 130048
    %s38 = scalar_lea.vmem [#allocation2], 9
    %39 = vst.msk [vmem:[%s38] sm:$0x1] %vm37, %v36
    %v40 = vld [vmem:[#allocation3] sm:$0x1]
    %41 = vrot.lane.b32.xlu0 %v40, 32
    %v42 = vpop.permute.xlu0 %41
    %vm43 = vcmask 130048
    %s44 = scalar_lea.vmem [#allocation2], 10
    %45 = vst.msk [vmem:[%s44] sm:$0x1] %vm43, %v42
    %v46 = vld [vmem:[#allocation3] sm:$0x1]
    %47 = vrot.lane.b32.xlu0 %v46, 16
    %v48 = vpop.permute.xlu0 %47
    %vm49 = vcmask 130048
    %s50 = scalar_lea.vmem [#allocation2], 11
    %51 = vst.msk [vmem:[%s50] sm:$0x1] %vm49, %v48
    %s53 = sshllo.u32 0, 4
    %v55 = vld [vmem:[#allocation2] sm:%s53]
    %s56 = sshllo.u32 0, 4
    %57 = vst [vmem:[#allocation0] sm:%s56] %v55
    %s58 = scalar_lea.vmem [#allocation2], 8
    %v59 = vld [vmem:[%s58] sm:%s53]
    %s60 = sshllo.u32 0, 4
    %s61 = scalar_lea.vmem [#allocation0], 4
    %62 = vst [vmem:[%s61] sm:%s60] %v59
    %s64 = ssub.s32 128, 128
    %65 = vsyncadd [#allocation1], %s64
    %s67 = sshll.u32 [#allocation0], 4
    %s68 = int_to_ptr.vmem [resolvable:$true] %s67
    %70 = dma.vmem_to_hbm [thread:$0]  %s68, 128, %s1, [#allocation1]
    %71 = dma.done [#allocation1], 128
    %72 = vsyncpa [#allocation1], 1

// kernel: pallas_sum.1
$region0: #{pallas_sum.1}
  #allocation0 [shape = 'u32[]', space=smem, size = 0x4, offset = 0x4, fixed_abs, tag = 'smem constant byte address 0x4 - core index']
  #allocation1 [shape = 'u32[144,128]{1,0:T(1,128)}', space=vmem, size = 0x12000, scoped, tag = 'internal scratch']
  #allocation2 [shape = 'f32[128,1]{1,0:T(8,128)}', space=vmem, size = 0x10000, scoped, tag = 'scratch operand']
  %s0 = inlined_call_operand.hbm [shape: f32[128,16], index: 0, kind: input, shape index: {}]
  %s1 = inlined_call_operand.vmem [shape: f32[128,1], index: 1, kind: output, shape index: {}]
  %s2 = sld [smem:[#allocation0]]
  $region26: #{pallas_sum.1} parent=0
    _
  %s4 = ssub.s32 1, %s2
  %s5 = scalar_select 0, %s4, %s2
  $region1: #{pallas_sum.1} parent=0
    #allocation3 [shape = 'u8[65536]{0}', space=vmem, size = 0x10000, scoped, tag = 'input window, operand 0, single buffered']
    #allocation4 [shape = 's32[1]{0}', space=sflag, size = 0x4, scoped, tag = 'scoped memory for pallas_sum.1']
    %6 = vsyncpa [#allocation4], 0
    // Predicated region
    $region2: #{pallas_sum.1} parent=1 // pred_check
      _
    $region3: #{pallas_sum.1} parent=1 // pred_check_branch
      %8 = sbr.rel (0) target = $region5
    $region4: #{pallas_sum.1} parent=1 // pred_region
      %s10 = ssub.s32 2048, 2048
      %11 = vsyncadd [#allocation4], %s10
      %s12 = sshll.u32 [#allocation3], 4
      %s13 = int_to_ptr.vmem [resolvable:$true] %s12
      %18 = dma.hbm_to_vmem [thread:$0]  %s0, 2048, %s13, [#allocation4], 128, 128, 8
    $region5: #{pallas_sum.1} parent=1 // pred_fallthru
      _
    // Predicated region
    $region6: #{pallas_sum.1} parent=1 // pred_check
      _
    $region7: #{pallas_sum.1} parent=1 // pred_check_branch
      %20 = sbr.rel (0) target = $region9
    $region8: #{pallas_sum.1} parent=1 // pred_region
      %21 = dma.done [#allocation4], 2048
    $region9: #{pallas_sum.1} parent=1 // pred_fallthru
      _
    %p22 = scmp.eq.s32.totalorder 0, 0
    // Predicated region
    $region10: #{pallas_sum.1} parent=1 // pred_check
      %p23 = pneg %p22
    $region11: #{pallas_sum.1} parent=1 // pred_check_branch
      %25 = sbr.rel (%p23) target = $region13
    $region12: #{pallas_sum.1} parent=1 // pred_region
      %vm26 = vcmask 7168
      %27 = vst.msk [vmem:[#allocation2] sm:$0xff] %vm26, 0.0
      %28 = vst.msk [vmem:[#allocation2 + $0x8] sm:$0xff] %vm26, 0.0
      %29 = vst.msk [vmem:[#allocation2 + $0x10] sm:$0xff] %vm26, 0.0
      %30 = vst.msk [vmem:[#allocation2 + $0x18] sm:$0xff] %vm26, 0.0
      %31 = vst.msk [vmem:[#allocation2 + $0x20] sm:$0xff] %vm26, 0.0
      %32 = vst.msk [vmem:[#allocation2 + $0x28] sm:$0xff] %vm26, 0.0
      %33 = vst.msk [vmem:[#allocation2 + $0x30] sm:$0xff] %vm26, 0.0
      %34 = vst.msk [vmem:[#allocation2 + $0x38] sm:$0xff] %vm26, 0.0
      %35 = vst.msk [vmem:[#allocation2 + $0x40] sm:$0xff] %vm26, 0.0
      %36 = vst.msk [vmem:[#allocation2 + $0x48] sm:$0xff] %vm26, 0.0
      %37 = vst.msk [vmem:[#allocation2 + $0x50] sm:$0xff] %vm26, 0.0
      %38 = vst.msk [vmem:[#allocation2 + $0x58] sm:$0xff] %vm26, 0.0
      %39 = vst.msk [vmem:[#allocation2 + $0x60] sm:$0xff] %vm26, 0.0
      %40 = vst.msk [vmem:[#allocation2 + $0x68] sm:$0xff] %vm26, 0.0
      %41 = vst.msk [vmem:[#allocation2 + $0x70] sm:$0xff] %vm26, 0.0
      %42 = vst.msk [vmem:[#allocation2 + $0x78] sm:$0xff] %vm26, 0.0
    $region13: #{pallas_sum.1} parent=1 // pred_fallthru
      _
    %v43 = vld [vmem:[#allocation2] sm:$0xff]
    %v44 = vld [vmem:[#allocation2 + $0x8] sm:$0xff]
    %v45 = vld [vmem:[#allocation2 + $0x10] sm:$0xff]
    %v46 = vld [vmem:[#allocation2 + $0x18] sm:$0xff]
    %v47 = vld [vmem:[#allocation2 + $0x20] sm:$0xff]
    %v48 = vld [vmem:[#allocation2 + $0x28] sm:$0xff]
    %v49 = vld [vmem:[#allocation2 + $0x30] sm:$0xff]
    %v50 = vld [vmem:[#allocation2 + $0x38] sm:$0xff]
    %v51 = vld [vmem:[#allocation2 + $0x40] sm:$0xff]
    %v52 = vld [vmem:[#allocation2 + $0x48] sm:$0xff]
    %v53 = vld [vmem:[#allocation2 + $0x50] sm:$0xff]
    %v54 = vld [vmem:[#allocation2 + $0x58] sm:$0xff]
    %v55 = vld [vmem:[#allocation2 + $0x60] sm:$0xff]
    %v56 = vld [vmem:[#allocation2 + $0x68] sm:$0xff]
    %v57 = vld [vmem:[#allocation2 + $0x70] sm:$0xff]
    %v58 = vld [vmem:[#allocation2 + $0x78] sm:$0xff]
    %v59 = vld [vmem:[#allocation3] sm:$0xff]
    %v60 = vld [vmem:[#allocation3 + $0x8] sm:$0xff]
    %v61 = vld [vmem:[#allocation3 + $0x10] sm:$0xff]
    %v62 = vld [vmem:[#allocation3 + $0x18] sm:$0xff]
    %v63 = vld [vmem:[#allocation3 + $0x20] sm:$0xff]
    %v64 = vld [vmem:[#allocation3 + $0x28] sm:$0xff]
    %v65 = vld [vmem:[#allocation3 + $0x30] sm:$0xff]
    %v66 = vld [vmem:[#allocation3 + $0x38] sm:$0xff]
    %v67 = vld [vmem:[#allocation3 + $0x40] sm:$0xff]
    %v68 = vld [vmem:[#allocation3 + $0x48] sm:$0xff]
    %v69 = vld [vmem:[#allocation3 + $0x50] sm:$0xff]
    %v70 = vld [vmem:[#allocation3 + $0x58] sm:$0xff]
    %v71 = vld [vmem:[#allocation3 + $0x60] sm:$0xff]
    %v72 = vld [vmem:[#allocation3 + $0x68] sm:$0xff]
    %v73 = vld [vmem:[#allocation3 + $0x70] sm:$0xff]
    %v74 = vld [vmem:[#allocation3 + $0x78] sm:$0xff]
    %vm75 = vcmask 130048
    %v76 = vsel %vm75, %v59, 0.0
    %77 = vadd.xlane.f32.xlu0 %v76
    %v78 = vpop.xlane.xlu0 %77
    %v79 = vsel %vm75, %v60, 0.0
    %80 = vadd.xlane.f32.xlu0 %v79
    %v81 = vpop.xlane.xlu0 %80
    %v82 = vsel %vm75, %v61, 0.0
    %83 = vadd.xlane.f32.xlu0 %v82
    %v84 = vpop.xlane.xlu0 %83
    %v85 = vsel %vm75, %v62, 0.0
    %86 = vadd.xlane.f32.xlu0 %v85
    %v87 = vpop.xlane.xlu0 %86
    %v88 = vsel %vm75, %v63, 0.0
    %89 = vadd.xlane.f32.xlu0 %v88
    %v90 = vpop.xlane.xlu0 %89
    %v91 = vsel %vm75, %v64, 0.0
    %92 = vadd.xlane.f32.xlu0 %v91
    %v93 = vpop.xlane.xlu0 %92
    %v94 = vsel %vm75, %v65, 0.0
    %95 = vadd.xlane.f32.xlu0 %v94
    %v96 = vpop.xlane.xlu0 %95
    %v97 = vsel %vm75, %v66, 0.0
    %98 = vadd.xlane.f32.xlu0 %v97
    %v99 = vpop.xlane.xlu0 %98
    %v100 = vsel %vm75, %v67, 0.0
    %101 = vadd.xlane.f32.xlu0 %v100
    %v102 = vpop.xlane.xlu0 %101
    %v103 = vsel %vm75, %v68, 0.0
    %104 = vadd.xlane.f32.xlu0 %v103
    %v105 = vpop.xlane.xlu0 %104
    %v106 = vsel %vm75, %v69, 0.0
    %107 = vadd.xlane.f32.xlu0 %v106
    %v108 = vpop.xlane.xlu0 %107
    %v109 = vsel %vm75, %v70, 0.0
    %110 = vadd.xlane.f32.xlu0 %v109
    %v111 = vpop.xlane.xlu0 %110
    %v112 = vsel %vm75, %v71, 0.0
    %113 = vadd.xlane.f32.xlu0 %v112
    %v114 = vpop.xlane.xlu0 %113
    %v115 = vsel %vm75, %v72, 0.0
    %116 = vadd.xlane.f32.xlu0 %v115
    %v117 = vpop.xlane.xlu0 %116
    %v118 = vsel %vm75, %v73, 0.0
    %119 = vadd.xlane.f32.xlu0 %v118
    %v120 = vpop.xlane.xlu0 %119
    %v121 = vsel %vm75, %v74, 0.0
    %122 = vadd.xlane.f32.xlu0 %v121
    %v123 = vpop.xlane.xlu0 %122
    %v124 = vadd.f32 %v43, %v78
    %v125 = vadd.f32 %v44, %v81
    %v126 = vadd.f32 %v45, %v84
    %v127 = vadd.f32 %v46, %v87
    %v128 = vadd.f32 %v47, %v90
    %v129 = vadd.f32 %v48, %v93
    %v130 = vadd.f32 %v49, %v96
    %v131 = vadd.f32 %v50, %v99
    %v132 = vadd.f32 %v51, %v102
    %v133 = vadd.f32 %v52, %v105
    %v134 = vadd.f32 %v53, %v108
    %v135 = vadd.f32 %v54, %v111
    %v136 = vadd.f32 %v55, %v114
    %v137 = vadd.f32 %v56, %v117
    %v138 = vadd.f32 %v57, %v120
    %v139 = vadd.f32 %v58, %v123
    %vm140 = vcmask 7168
    %141 = vst.msk [vmem:[#allocation2] sm:$0xff] %vm140, %v124
    %142 = vst.msk [vmem:[#allocation2 + $0x8] sm:$0xff] %vm140, %v125
    %143 = vst.msk [vmem:[#allocation2 + $0x10] sm:$0xff] %vm140, %v126
    %144 = vst.msk [vmem:[#allocation2 + $0x18] sm:$0xff] %vm140, %v127
    %145 = vst.msk [vmem:[#allocation2 + $0x20] sm:$0xff] %vm140, %v128
    %146 = vst.msk [vmem:[#allocation2 + $0x28] sm:$0xff] %vm140, %v129
    %147 = vst.msk [vmem:[#allocation2 + $0x30] sm:$0xff] %vm140, %v130
    %148 = vst.msk [vmem:[#allocation2 + $0x38] sm:$0xff] %vm140, %v131
    %149 = vst.msk [vmem:[#allocation2 + $0x40] sm:$0xff] %vm140, %v132
    %150 = vst.msk [vmem:[#allocation2 + $0x48] sm:$0xff] %vm140, %v133
    %151 = vst.msk [vmem:[#allocation2 + $0x50] sm:$0xff] %vm140, %v134
    %152 = vst.msk [vmem:[#allocation2 + $0x58] sm:$0xff] %vm140, %v135
    %153 = vst.msk [vmem:[#allocation2 + $0x60] sm:$0xff] %vm140, %v136
    %154 = vst.msk [vmem:[#allocation2 + $0x68] sm:$0xff] %vm140, %v137
    %155 = vst.msk [vmem:[#allocation2 + $0x70] sm:$0xff] %vm140, %v138
    %156 = vst.msk [vmem:[#allocation2 + $0x78] sm:$0xff] %vm140, %v139
    // Predicated region
    $region14: #{pallas_sum.1} parent=1 // pred_check
      %p157 = pneg %p22
    $region15: #{pallas_sum.1} parent=1 // pred_check_branch
      %159 = sbr.rel (%p157) target = $region17
    $region16: #{pallas_sum.1} parent=1 // pred_region
      %v160 = vld [vmem:[#allocation2] sm:$0xff]
      %v161 = vld [vmem:[#allocation2 + $0x8] sm:$0xff]
      %v162 = vld [vmem:[#allocation2 + $0x10] sm:$0xff]
      %v163 = vld [vmem:[#allocation2 + $0x18] sm:$0xff]
      %v164 = vld [vmem:[#allocation2 + $0x20] sm:$0xff]
      %v165 = vld [vmem:[#allocation2 + $0x28] sm:$0xff]
      %v166 = vld [vmem:[#allocation2 + $0x30] sm:$0xff]
      %v167 = vld [vmem:[#allocation2 + $0x38] sm:$0xff]
      %v168 = vld [vmem:[#allocation2 + $0x40] sm:$0xff]
      %v169 = vld [vmem:[#allocation2 + $0x48] sm:$0xff]
      %v170 = vld [vmem:[#allocation2 + $0x50] sm:$0xff]
      %v171 = vld [vmem:[#allocation2 + $0x58] sm:$0xff]
      %v172 = vld [vmem:[#allocation2 + $0x60] sm:$0xff]
      %v173 = vld [vmem:[#allocation2 + $0x68] sm:$0xff]
      %v174 = vld [vmem:[#allocation2 + $0x70] sm:$0xff]
      %v175 = vld [vmem:[#allocation2 + $0x78] sm:$0xff]
      %176 = vst.msk [vmem:[%s1] sm:$0xff] %vm140, %v160
      %177 = vst.msk [vmem:[%s1 + $0x8] sm:$0xff] %vm140, %v161
      %178 = vst.msk [vmem:[%s1 + $0x10] sm:$0xff] %vm140, %v162
      %179 = vst.msk [vmem:[%s1 + $0x18] sm:$0xff] %vm140, %v163
      %180 = vst.msk [vmem:[%s1 + $0x20] sm:$0xff] %vm140, %v164
      %181 = vst.msk [vmem:[%s1 + $0x28] sm:$0xff] %vm140, %v165
      %182 = vst.msk [vmem:[%s1 + $0x30] sm:$0xff] %vm140, %v166
      %183 = vst.msk [vmem:[%s1 + $0x38] sm:$0xff] %vm140, %v167
      %184 = vst.msk [vmem:[%s1 + $0x40] sm:$0xff] %vm140, %v168
      %185 = vst.msk [vmem:[%s1 + $0x48] sm:$0xff] %vm140, %v169
      %186 = vst.msk [vmem:[%s1 + $0x50] sm:$0xff] %vm140, %v170
      %187 = vst.msk [vmem:[%s1 + $0x58] sm:$0xff] %vm140, %v171
      %188 = vst.msk [vmem:[%s1 + $0x60] sm:$0xff] %vm140, %v172
      %189 = vst.msk [vmem:[%s1 + $0x68] sm:$0xff] %vm140, %v173
      %190 = vst.msk [vmem:[%s1 + $0x70] sm:$0xff] %vm140, %v174
      %191 = vst.msk [vmem:[%s1 + $0x78] sm:$0xff] %vm140, %v175
    $region17: #{pallas_sum.1} parent=1 // pred_fallthru
      _
    // Predicated region
    $region18: #{pallas_sum.1} parent=1 // pred_check
      _
    $region19: #{pallas_sum.1} parent=1 // pred_check_branch
      %193 = sbr.rel (0) target = $region21
    $region20: #{pallas_sum.1} parent=1 // pred_region
      _
    $region21: #{pallas_sum.1} parent=1 // pred_fallthru
      _
    // Predicated region
    $region22: #{pallas_sum.1} parent=1 // pred_check
      _
    $region23: #{pallas_sum.1} parent=1 // pred_check_branch
      %195 = sbr.rel (0) target = $region25
    $region24: #{pallas_sum.1} parent=1 // pred_region
      _
    $region25: #{pallas_sum.1} parent=1 // pred_fallthru
      _
    %196 = vsyncpa [#allocation4], 1

</llo_original>
